<compile_context>
chip_gen: v7x
topology: tpu7x:2x2x1
jax: 0.10.0
libtpu: 0.0.40
codegen_flags: <defaults>
</compile_context>

<pallas_src>
import functools
import math

import jax
import jax.numpy as jnp
import numpy as np
from jax.experimental import pallas as pl
from jax.experimental.pallas import tpu as pltpu

_MASK_VALUE = -1e30   # behaves exactly like -inf under exp() after row-max subtraction


# ----------------------------------------------------------------------------
# Pallas kernel
# ----------------------------------------------------------------------------
def full_attention_kernel(q_ref, k_ref, v_ref, o_ref, *,
                          scale, mask_flag, num_heads, e_dim, d_dim):
    """FullAttention for a block of batch elements.

    q_ref: (Bblk, L, H*E) bf16   k_ref: (Bblk, S, H*E) bf16   v_ref: (Bblk, S, H*D) bf16
    o_ref: (Bblk, L, H*D) f32    (heads packed along the lane axis -> lane-dense store)
    """
    # Fold scale into q once (weak-typed Python float keeps bf16) -- O(B*L*H*E) instead of the
    # O(B*H*L*S) score-block multiply.  Valid because scale > 0 (checked in the wrapper).
    q = q_ref[...] * scale                         # (Bblk, L, H*E) bf16
    k = k_ref[...]                                 # (Bblk, S, H*E) bf16
    v = v_ref[...]                                 # (Bblk, S, H*D) bf16
    L = q.shape[1]
    S = k.shape[1]

    if mask_flag:
        # TriangularCausalMask: strictly-upper-triangular positions masked (attn_mask=None path).
        row = jax.lax.broadcasted_iota(jnp.int32, (L, S), 0)
        col = jax.lax.broadcasted_iota(jnp.int32, (L, S), 1)
        causal = (col > row)[None, :, :]           # (1, L, S) broadcast over the batch block

    # Heads live contiguously on the lane axis -> each head is a static lane slice (no
    # major-dim transposes / relayouts needed).  H is small and static, so this unrolls.
    head_outs = []
    for h in range(num_heads):
        qh = q[:, :, h * e_dim:(h + 1) * e_dim]    # (Bblk, L, E) bf16
        kh = k[:, :, h * e_dim:(h + 1) * e_dim]    # (Bblk, S, E) bf16
        vh = v[:, :, h * d_dim:(h + 1) * d_dim]    # (Bblk, S, D) bf16

        # scores (Bblk, L, S): bf16 operands on the MXU, f32 accumulation.
        s = jnp.einsum("ble,bse->bls", qh, kh, preferred_element_type=jnp.float32)
        if mask_flag:
            s = jnp.where(causal, _MASK_VALUE, s)

        # Numerically-stable softmax in f32; reciprocal on the (otherwise idle) EUP slot.
        s = s - jnp.max(s, axis=-1, keepdims=True)
        p = jnp.exp(s)
        p = p * pl.reciprocal(jnp.sum(p, axis=-1, keepdims=True), approx=True)
        # attention_dropout is identity in eval/inference mode.

        # V_h (Bblk, L, D): bf16 operands, f32 accumulation.
        head_outs.append(jnp.einsum("bls,bsd->bld", p.astype(jnp.bfloat16), vh,
                                    preferred_element_type=jnp.float32))

    # One lane-dense (Bblk, L, H*D) store (H*D lanes) instead of per-head D-lane partial stores.
    o_ref[...] = jnp.concatenate(head_outs, axis=-1)


# ----------------------------------------------------------------------------
# Wrapper
# ----------------------------------------------------------------------------
def _pick_batch_block(batch):
    """Largest divisor of `batch` that batches 2-8 elements per step while keeping >= 2 grid
    steps (v7x has 2 TensorCores; v5e/v6e are single-TC so the extra steps are harmless)."""
    if batch < 2:
        return 1
    cap = min(8, batch // 2)
    for cand in range(cap, 0, -1):
        if batch % cand == 0:
            return cand
    return 1


def full_attention(queries, keys, values, attn_mask=None, *,
                   mask_flag=True, scale=None, output_attention=False):
    """Mirrors FullAttention.forward (eval mode). Returns (V, None)."""
    if attn_mask is not None:
        # TODO(synk): externally supplied boolean attn_mask; only the built-in causal mask is kerneled.
        raise NotImplementedError("explicit attn_mask not supported; use mask_flag")
    if output_attention:
        # TODO(synk): output_attention=True (returning the attention matrix) not kerneled.
        raise NotImplementedError("output_attention=True not supported")

    B, L, H, E = queries.shape
    _, S, _, D = values.shape
    sc = float(scale) if scale is not None else 1.0 / math.sqrt(E)
    if sc <= 0.0:
        # scale is folded into q *before* masking; only equivalent to PyTorch for scale > 0.
        raise ValueError("scale must be > 0")

    # bf16 once upstream (no-op if the caller already passes bf16) + FREE trailing-dim merge:
    # (B, L, H, E) -> (B, L, H*E) preserves the memory layout -- no HBM transpose round trips.
    qf = queries.astype(jnp.bfloat16).reshape(B, L, H * E)
    kf = keys.astype(jnp.bfloat16).reshape(B, S, H * E)
    vf = values.astype(jnp.bfloat16).reshape(B, S, H * D)

    bblk = _pick_batch_block(B)
    grid = (B // bblk,)

    # Advisory cost estimate so XLA can schedule/overlap the custom call.
    flops = 2 * B * H * L * S * (E + D)
    transcendentals = B * H * L * S
    bytes_accessed = 2 * (qf.size + kf.size + vf.size) + 4 * B * L * H * D

    out = pl.pallas_call(
        functools.partial(full_attention_kernel, scale=sc, mask_flag=mask_flag,
                          num_heads=H, e_dim=E, d_dim=D),
        out_shape=jax.ShapeDtypeStruct((B, L, H * D), jnp.float32),
        grid=grid,
        in_specs=[
            pl.BlockSpec((bblk, L, H * E), lambda b: (b, 0, 0)),
            pl.BlockSpec((bblk, S, H * E), lambda b: (b, 0, 0)),
            pl.BlockSpec((bblk, S, H * D), lambda b: (b, 0, 0)),
        ],
        out_specs=pl.BlockSpec((bblk, L, H * D), lambda b: (b, 0, 0)),
        compiler_params=pltpu.CompilerParams(
            dimension_semantics=("parallel",),      # >= 2 steps when B >= 2 -> both v7x TCs
            vmem_limit_bytes=32 * 1024 * 1024,
        ),
        cost_estimate=pl.CostEstimate(flops=flops, transcendentals=transcendentals,
                                      bytes_accessed=bytes_accessed),
    )(qf, kf, vf)

    V = out.reshape(B, L, H, D)                    # free reshape back to PyTorch (B, L, H, D)
    return V, None                                 # output_attention=False -> attn is None


# ----------------------------------------------------------------------------
# Pure-JAX reference (faithful f32 semantics of the PyTorch module)
# ----------------------------------------------------------------------------
def ref_full_attention(queries, keys, values, *, mask_flag=True, scale=None):
    B, L, H, E = queries.shape
    _, S, _, D = values.shape
    sc = scale if scale is not None else 1.0 / math.sqrt(E)
    scores = jnp.einsum("blhe,bshe->bhls", queries, keys)
    if mask_flag:
        causal = jnp.triu(jnp.ones((L, S), dtype=bool), k=1)
        scores = jnp.where(causal[None, None], -jnp.inf, scores)
    A = jax.nn.softmax(sc * scores, axis=-1)
    V = jnp.einsum("bhls,bshd->blhd", A, values)
    return V


if __name__ == "__main__":
    # queries/keys: (B, L, H, E); values: (B, S, H, D); d_model = H*E = 32
    B, L, S, H, E, D = 2, 16, 16, 4, 8, 8

    key = jax.random.PRNGKey(0)
    kq, kk, kv = jax.random.split(key, 3)
    q = jax.random.normal(kq, (B, L, H, E), jnp.float32)
    k = jax.random.normal(kk, (B, S, H, E), jnp.float32)
    v = jax.random.normal(kv, (B, S, H, D), jnp.float32)

    for mask_flag in (True, False):   # causal (module default) and encoder-style unmasked
        V, A = full_attention(q, k, v, mask_flag=mask_flag)
        V = jax.block_until_ready(V)
        V_ref = ref_full_attention(q, k, v, mask_flag=mask_flag)
        # bf16 inputs / bf16-folded scale / approx reciprocal vs full-f32 reference -> 4e-2 tol.
        np.testing.assert_allclose(np.asarray(V), np.asarray(V_ref), rtol=4e-2, atol=4e-2)
        assert A is None              # output_attention=False

    print("KERNEL_OK")
</pallas_src>

<mosaic_0001>
module attributes {stable_mosaic.version = 11 : i64} {
  func.func @full_attention_kernel(%arg0: i32, %arg1: memref<1x16x32xbf16, #tpu.memory_space<vmem>>, %arg2: memref<1x16x32xbf16, #tpu.memory_space<vmem>>, %arg3: memref<1x16x32xbf16, #tpu.memory_space<vmem>>, %arg4: memref<1x16x32xf32, #tpu.memory_space<vmem>>) attributes {dimension_semantics = [#tpu.dimension_semantics<parallel>], iteration_bounds = array<i64: 2>, scalar_prefetch = 0 : i64, scratch_operands = 0 : i64, tpu.core_type = #tpu.core_type<tc>, window_params = [{transform_indices = @transform_0, window_bounds = array<i64: 1, 16, 32>}, {transform_indices = @transform_1, window_bounds = array<i64: 1, 16, 32>}, {transform_indices = @transform_2, window_bounds = array<i64: 1, 16, 32>}, {transform_indices = @transform_3, window_bounds = array<i64: 1, 16, 32>}]} {
    %c0 = arith.constant 0 : index
    %c0_0 = arith.constant 0 : index
    %c0_1 = arith.constant 0 : index
    %0 = vector.load %arg1[%c0, %c0_0, %c0_1] : memref<1x16x32xbf16, #tpu.memory_space<vmem>>, vector<1x16x32xbf16>
    %cst = arith.constant 3.535160e-01 : bf16
    %1 = vector.broadcast %cst : bf16 to vector<1x16x32xbf16>
    %2 = arith.mulf %0, %1 : vector<1x16x32xbf16>
    %c0_2 = arith.constant 0 : index
    %c0_3 = arith.constant 0 : index
    %c0_4 = arith.constant 0 : index
    %3 = vector.load %arg2[%c0_2, %c0_3, %c0_4] : memref<1x16x32xbf16, #tpu.memory_space<vmem>>, vector<1x16x32xbf16>
    %c0_5 = arith.constant 0 : index
    %c0_6 = arith.constant 0 : index
    %c0_7 = arith.constant 0 : index
    %4 = vector.load %arg3[%c0_5, %c0_6, %c0_7] : memref<1x16x32xbf16, #tpu.memory_space<vmem>>, vector<1x16x32xbf16>
    %5 = tpu.iota {dimensions = array<i32: 0>} : vector<16x16xi32>
    %6 = tpu.iota {dimensions = array<i32: 1>} : vector<16x16xi32>
    %7 = arith.cmpi sgt, %6, %5 : vector<16x16xi32>
    %8 = vector.shape_cast %7 : vector<16x16xi1> to vector<1x16x16xi1>
    %9 = vector.extract_strided_slice %2 {offsets = [0, 0, 0], sizes = [1, 16, 8], strides = [1, 1, 1]} : vector<1x16x32xbf16> to vector<1x16x8xbf16>
    %10 = vector.extract_strided_slice %3 {offsets = [0, 0, 0], sizes = [1, 16, 8], strides = [1, 1, 1]} : vector<1x16x32xbf16> to vector<1x16x8xbf16>
    %11 = vector.extract_strided_slice %4 {offsets = [0, 0, 0], sizes = [1, 16, 8], strides = [1, 1, 1]} : vector<1x16x32xbf16> to vector<1x16x8xbf16>
    "tpu.trace_start"() <{level = 10 : i32, message = "ble,bse->bls"}> : () -> ()
    %cst_8 = arith.constant dense<0.000000e+00> : vector<1x16x16xf32>
    %12 = tpu.matmul %9, %10, %cst_8 {dimension_numbers = #tpu.dot_dimension_numbers<[2], [2], [1], [1], [0, 0, 0, 1, 1, 1], [0], [0]>} : vector<1x16x8xbf16>, vector<1x16x8xbf16>, vector<1x16x16xf32> -> vector<1x16x16xf32>
    %cst_9 = arith.constant -1.000000e+30 : f32
    "tpu.trace_stop"() : () -> ()
    %13 = vector.broadcast %cst_9 : f32 to vector<1x16x16xf32>
    %14 = arith.select %8, %13, %12 : vector<1x16x16xi1>, vector<1x16x16xf32>
    %cst_10 = arith.constant dense<0xFF800000> : vector<1x16xf32>
    %15 = vector.multi_reduction <maximumf>, %14, %cst_10 [2] : vector<1x16x16xf32> to vector<1x16xf32>
    %16 = vector.shape_cast %15 : vector<1x16xf32> to vector<1x16x1xf32>
    %17 = vector.broadcast %16 : vector<1x16x1xf32> to vector<1x16x16xf32>
    %18 = arith.subf %14, %17 : vector<1x16x16xf32>
    %19 = math.exp %18 : vector<1x16x16xf32>
    %cst_11 = arith.constant dense<0.000000e+00> : vector<1x16xf32>
    %20 = vector.multi_reduction <add>, %19, %cst_11 [2] : vector<1x16x16xf32> to vector<1x16xf32>
    %21 = vector.shape_cast %20 : vector<1x16xf32> to vector<1x16x1xf32>
    %22 = tpu.reciprocal %21 {approx = true} : vector<1x16x1xf32> -> vector<1x16x1xf32>
    %23 = vector.broadcast %22 : vector<1x16x1xf32> to vector<1x16x16xf32>
    %24 = arith.mulf %19, %23 : vector<1x16x16xf32>
    %25 = arith.truncf %24 : vector<1x16x16xf32> to vector<1x16x16xbf16>
    "tpu.trace_start"() <{level = 10 : i32, message = "bls,bsd->bld"}> : () -> ()
    %cst_12 = arith.constant dense<0.000000e+00> : vector<1x16x8xf32>
    %26 = tpu.matmul %25, %11, %cst_12 {dimension_numbers = #tpu.dot_dimension_numbers<[2], [1], [1], [2], [0, 0, 0, 1, 1, 2], [0], [0]>} : vector<1x16x16xbf16>, vector<1x16x8xbf16>, vector<1x16x8xf32> -> vector<1x16x8xf32>
    "tpu.trace_stop"() : () -> ()
    %27 = vector.extract_strided_slice %2 {offsets = [0, 0, 8], sizes = [1, 16, 8], strides = [1, 1, 1]} : vector<1x16x32xbf16> to vector<1x16x8xbf16>
    %28 = vector.extract_strided_slice %3 {offsets = [0, 0, 8], sizes = [1, 16, 8], strides = [1, 1, 1]} : vector<1x16x32xbf16> to vector<1x16x8xbf16>
    %29 = vector.extract_strided_slice %4 {offsets = [0, 0, 8], sizes = [1, 16, 8], strides = [1, 1, 1]} : vector<1x16x32xbf16> to vector<1x16x8xbf16>
    "tpu.trace_start"() <{level = 10 : i32, message = "ble,bse->bls"}> : () -> ()
    %cst_13 = arith.constant dense<0.000000e+00> : vector<1x16x16xf32>
    %30 = tpu.matmul %27, %28, %cst_13 {dimension_numbers = #tpu.dot_dimension_numbers<[2], [2], [1], [1], [0, 0, 0, 1, 1, 1], [0], [0]>} : vector<1x16x8xbf16>, vector<1x16x8xbf16>, vector<1x16x16xf32> -> vector<1x16x16xf32>
    %cst_14 = arith.constant -1.000000e+30 : f32
    "tpu.trace_stop"() : () -> ()
    %31 = vector.broadcast %cst_14 : f32 to vector<1x16x16xf32>
    %32 = arith.select %8, %31, %30 : vector<1x16x16xi1>, vector<1x16x16xf32>
    %cst_15 = arith.constant dense<0xFF800000> : vector<1x16xf32>
    %33 = vector.multi_reduction <maximumf>, %32, %cst_15 [2] : vector<1x16x16xf32> to vector<1x16xf32>
    %34 = vector.shape_cast %33 : vector<1x16xf32> to vector<1x16x1xf32>
    %35 = vector.broadcast %34 : vector<1x16x1xf32> to vector<1x16x16xf32>
    %36 = arith.subf %32, %35 : vector<1x16x16xf32>
    %37 = math.exp %36 : vector<1x16x16xf32>
    %cst_16 = arith.constant dense<0.000000e+00> : vector<1x16xf32>
    %38 = vector.multi_reduction <add>, %37, %cst_16 [2] : vector<1x16x16xf32> to vector<1x16xf32>
    %39 = vector.shape_cast %38 : vector<1x16xf32> to vector<1x16x1xf32>
    %40 = tpu.reciprocal %39 {approx = true} : vector<1x16x1xf32> -> vector<1x16x1xf32>
    %41 = vector.broadcast %40 : vector<1x16x1xf32> to vector<1x16x16xf32>
    %42 = arith.mulf %37, %41 : vector<1x16x16xf32>
    %43 = arith.truncf %42 : vector<1x16x16xf32> to vector<1x16x16xbf16>
    "tpu.trace_start"() <{level = 10 : i32, message = "bls,bsd->bld"}> : () -> ()
    %cst_17 = arith.constant dense<0.000000e+00> : vector<1x16x8xf32>
    %44 = tpu.matmul %43, %29, %cst_17 {dimension_numbers = #tpu.dot_dimension_numbers<[2], [1], [1], [2], [0, 0, 0, 1, 1, 2], [0], [0]>} : vector<1x16x16xbf16>, vector<1x16x8xbf16>, vector<1x16x8xf32> -> vector<1x16x8xf32>
    "tpu.trace_stop"() : () -> ()
    %45 = vector.extract_strided_slice %2 {offsets = [0, 0, 16], sizes = [1, 16, 8], strides = [1, 1, 1]} : vector<1x16x32xbf16> to vector<1x16x8xbf16>
    %46 = vector.extract_strided_slice %3 {offsets = [0, 0, 16], sizes = [1, 16, 8], strides = [1, 1, 1]} : vector<1x16x32xbf16> to vector<1x16x8xbf16>
    %47 = vector.extract_strided_slice %4 {offsets = [0, 0, 16], sizes = [1, 16, 8], strides = [1, 1, 1]} : vector<1x16x32xbf16> to vector<1x16x8xbf16>
    "tpu.trace_start"() <{level = 10 : i32, message = "ble,bse->bls"}> : () -> ()
    %cst_18 = arith.constant dense<0.000000e+00> : vector<1x16x16xf32>
    %48 = tpu.matmul %45, %46, %cst_18 {dimension_numbers = #tpu.dot_dimension_numbers<[2], [2], [1], [1], [0, 0, 0, 1, 1, 1], [0], [0]>} : vector<1x16x8xbf16>, vector<1x16x8xbf16>, vector<1x16x16xf32> -> vector<1x16x16xf32>
    %cst_19 = arith.constant -1.000000e+30 : f32
    "tpu.trace_stop"() : () -> ()
    %49 = vector.broadcast %cst_19 : f32 to vector<1x16x16xf32>
    %50 = arith.select %8, %49, %48 : vector<1x16x16xi1>, vector<1x16x16xf32>
    %cst_20 = arith.constant dense<0xFF800000> : vector<1x16xf32>
    %51 = vector.multi_reduction <maximumf>, %50, %cst_20 [2] : vector<1x16x16xf32> to vector<1x16xf32>
    %52 = vector.shape_cast %51 : vector<1x16xf32> to vector<1x16x1xf32>
    %53 = vector.broadcast %52 : vector<1x16x1xf32> to vector<1x16x16xf32>
    %54 = arith.subf %50, %53 : vector<1x16x16xf32>
    %55 = math.exp %54 : vector<1x16x16xf32>
    %cst_21 = arith.constant dense<0.000000e+00> : vector<1x16xf32>
    %56 = vector.multi_reduction <add>, %55, %cst_21 [2] : vector<1x16x16xf32> to vector<1x16xf32>
    %57 = vector.shape_cast %56 : vector<1x16xf32> to vector<1x16x1xf32>
    %58 = tpu.reciprocal %57 {approx = true} : vector<1x16x1xf32> -> vector<1x16x1xf32>
    %59 = vector.broadcast %58 : vector<1x16x1xf32> to vector<1x16x16xf32>
    %60 = arith.mulf %55, %59 : vector<1x16x16xf32>
    %61 = arith.truncf %60 : vector<1x16x16xf32> to vector<1x16x16xbf16>
    "tpu.trace_start"() <{level = 10 : i32, message = "bls,bsd->bld"}> : () -> ()
    %cst_22 = arith.constant dense<0.000000e+00> : vector<1x16x8xf32>
    %62 = tpu.matmul %61, %47, %cst_22 {dimension_numbers = #tpu.dot_dimension_numbers<[2], [1], [1], [2], [0, 0, 0, 1, 1, 2], [0], [0]>} : vector<1x16x16xbf16>, vector<1x16x8xbf16>, vector<1x16x8xf32> -> vector<1x16x8xf32>
    "tpu.trace_stop"() : () -> ()
    %63 = vector.extract_strided_slice %2 {offsets = [0, 0, 24], sizes = [1, 16, 8], strides = [1, 1, 1]} : vector<1x16x32xbf16> to vector<1x16x8xbf16>
    %64 = vector.extract_strided_slice %3 {offsets = [0, 0, 24], sizes = [1, 16, 8], strides = [1, 1, 1]} : vector<1x16x32xbf16> to vector<1x16x8xbf16>
    %65 = vector.extract_strided_slice %4 {offsets = [0, 0, 24], sizes = [1, 16, 8], strides = [1, 1, 1]} : vector<1x16x32xbf16> to vector<1x16x8xbf16>
    "tpu.trace_start"() <{level = 10 : i32, message = "ble,bse->bls"}> : () -> ()
    %cst_23 = arith.constant dense<0.000000e+00> : vector<1x16x16xf32>
    %66 = tpu.matmul %63, %64, %cst_23 {dimension_numbers = #tpu.dot_dimension_numbers<[2], [2], [1], [1], [0, 0, 0, 1, 1, 1], [0], [0]>} : vector<1x16x8xbf16>, vector<1x16x8xbf16>, vector<1x16x16xf32> -> vector<1x16x16xf32>
    %cst_24 = arith.constant -1.000000e+30 : f32
    "tpu.trace_stop"() : () -> ()
    %67 = vector.broadcast %cst_24 : f32 to vector<1x16x16xf32>
    %68 = arith.select %8, %67, %66 : vector<1x16x16xi1>, vector<1x16x16xf32>
    %cst_25 = arith.constant dense<0xFF800000> : vector<1x16xf32>
    %69 = vector.multi_reduction <maximumf>, %68, %cst_25 [2] : vector<1x16x16xf32> to vector<1x16xf32>
    %70 = vector.shape_cast %69 : vector<1x16xf32> to vector<1x16x1xf32>
    %71 = vector.broadcast %70 : vector<1x16x1xf32> to vector<1x16x16xf32>
    %72 = arith.subf %68, %71 : vector<1x16x16xf32>
    %73 = math.exp %72 : vector<1x16x16xf32>
    %cst_26 = arith.constant dense<0.000000e+00> : vector<1x16xf32>
    %74 = vector.multi_reduction <add>, %73, %cst_26 [2] : vector<1x16x16xf32> to vector<1x16xf32>
    %75 = vector.shape_cast %74 : vector<1x16xf32> to vector<1x16x1xf32>
    %76 = tpu.reciprocal %75 {approx = true} : vector<1x16x1xf32> -> vector<1x16x1xf32>
    %77 = vector.broadcast %76 : vector<1x16x1xf32> to vector<1x16x16xf32>
    %78 = arith.mulf %73, %77 : vector<1x16x16xf32>
    %79 = arith.truncf %78 : vector<1x16x16xf32> to vector<1x16x16xbf16>
    "tpu.trace_start"() <{level = 10 : i32, message = "bls,bsd->bld"}> : () -> ()
    %cst_27 = arith.constant dense<0.000000e+00> : vector<1x16x8xf32>
    %80 = tpu.matmul %79, %65, %cst_27 {dimension_numbers = #tpu.dot_dimension_numbers<[2], [1], [1], [2], [0, 0, 0, 1, 1, 2], [0], [0]>} : vector<1x16x16xbf16>, vector<1x16x8xbf16>, vector<1x16x8xf32> -> vector<1x16x8xf32>
    "tpu.trace_stop"() : () -> ()
    %81 = tpu.concatenate %26, %44, %62, %80 in 2 : vector<1x16x8xf32>, vector<1x16x8xf32>, vector<1x16x8xf32>, vector<1x16x8xf32> -> vector<1x16x32xf32>
    %c0_28 = arith.constant 0 : index
    %c0_29 = arith.constant 0 : index
    %c0_30 = arith.constant 0 : index
    %82 = vector.load %arg4[%c0_28, %c0_29, %c0_30] : memref<1x16x32xf32, #tpu.memory_space<vmem>>, vector<1x16x32xf32>
    tpu.vector_store %arg4[%c0_28, %c0_29, %c0_30], %81 {strides = array<i32>} : memref<1x16x32xf32, #tpu.memory_space<vmem>>, vector<1x16x32xf32>,
    return
  }
  func.func @transform_0(%arg0: i32) -> (i32, i32, i32) {
    %c0_i32 = arith.constant 0 : i32
    %c0_i32_0 = arith.constant 0 : i32
    %c0_i32_1 = arith.constant 0 : i32
    return %arg0, %c0_i32, %c0_i32_0 : i32, i32, i32
  }
  func.func @transform_1(%arg0: i32) -> (i32, i32, i32) {
    %c0_i32 = arith.constant 0 : i32
    %c0_i32_0 = arith.constant 0 : i32
    %c0_i32_1 = arith.constant 0 : i32
    return %arg0, %c0_i32, %c0_i32_0 : i32, i32, i32
  }
  func.func @transform_2(%arg0: i32) -> (i32, i32, i32) {
    %c0_i32 = arith.constant 0 : i32
    %c0_i32_0 = arith.constant 0 : i32
    %c0_i32_1 = arith.constant 0 : i32
    return %arg0, %c0_i32, %c0_i32_0 : i32, i32, i32
  }
  func.func @transform_3(%arg0: i32) -> (i32, i32, i32) {
    %c0_i32 = arith.constant 0 : i32
    %c0_i32_0 = arith.constant 0 : i32
    %c0_i32_1 = arith.constant 0 : i32
    return %arg0, %c0_i32, %c0_i32_0 : i32, i32, i32
  }
}

</mosaic_0001>

<llo_original>
// kernel: tpu_custom_call.1
$region0: #{tpu_custom_call.1}
  #allocation0 [shape = 'u32[]', space=smem, size = 0x4, offset = 0x4, fixed_abs, tag = 'smem constant byte address 0x4 - core index']
  #allocation1 [shape = 'u32[144,128]{1,0:T(1,128)}', space=vmem, size = 0x12000, scoped, tag = 'internal scratch']
  %s0 = inlined_call_operand.hbm [shape: bf16[2,16,32], index: 0, kind: input, shape index: {}]
  %s1 = inlined_call_operand.hbm [shape: bf16[2,16,32], index: 1, kind: input, shape index: {}]
  %s2 = inlined_call_operand.hbm [shape: bf16[2,16,32], index: 2, kind: input, shape index: {}]
  %s3 = inlined_call_operand.hbm [shape: f32[2,16,32], index: 3, kind: output, shape index: {}]
  %s4 = sld [smem:[#allocation0]]
  $region57: #{tpu_custom_call.1} parent=0
    _
  %s6 = ssub.s32 1, %s4
  %s7 = scalar_select 0, %s6, %s4
  $region1: #{tpu_custom_call.1} parent=0
    #allocation2 [shape = 'u8[8192]{0}', space=vmem, size = 0x2000, scoped, tag = 'input window, operand 0']
    #allocation3 [shape = 's32[2]{0}', space=sflag, size = 0x8, scoped, tag = 'scoped memory for tpu_custom_call.1']
    #allocation4 [shape = 's32[2]{0}', space=sflag, size = 0x8, scoped, tag = 'scoped memory for tpu_custom_call.1']
    #allocation5 [shape = 'u8[8192]{0}', space=vmem, size = 0x2000, scoped, tag = 'input window, operand 1']
    #allocation6 [shape = 's32[2]{0}', space=sflag, size = 0x8, scoped, tag = 'scoped memory for tpu_custom_call.1']
    #allocation7 [shape = 'u8[8192]{0}', space=vmem, size = 0x2000, scoped, tag = 'input window, operand 2']
    #allocation8 [shape = 'u8[16384]{0}', space=vmem, size = 0x4000, scoped, tag = 'output window, operand 0']
    %8 = vsyncpa [#allocation3], 0
    %s9 = scalar_lea.sflag [#allocation3], 1
    %10 = vsyncpa %s9, 0
    %11 = vsyncpa [#allocation6], 0
    %s12 = scalar_lea.sflag [#allocation6], 1
    %13 = vsyncpa %s12, 0
    %14 = vsyncpa [#allocation4], 0
    %s15 = scalar_lea.sflag [#allocation4], 1
    %16 = vsyncpa %s15, 0
    loop: start=0, step=1, limit=4
    $region2: #{tpu_custom_call.1} parent=1 // loop_pre_header
      _
    $region3: #{tpu_custom_call.1} parent=1 // loop_header
      %s18 = sphi 0, %s22
      %p19 = scmp.ge.s32.totalorder %s18, 4
      %s28 = sphi 0, %s30
      %s31 = sphi 0, %s28
      %s32 = sphi 0, %s31
      %s48 = sphi 0, %s32
      %s54 = sphi 0, %s56
      %s57 = sphi 0, %s54
      %s58 = sphi 0, %s57
      %s74 = sphi 0, %s58
      %s80 = sphi 0, %s82
      %s83 = sphi 0, %s80
      %s84 = sphi 0, %s83
      %s100 = sphi 0, %s84
      %s106 = sphi 0, %s108
      %s109 = sphi 0, %s106
      %s110 = sphi 0, %s109
      %s126 = sphi 0, %s110
    $region4: #{tpu_custom_call.1} parent=1 // loop_header_branch
      %21 = sbr.rel (%p19) target = $region8
    $region5: #{tpu_custom_call.1} parent=1 // loop_body
      %s23 = ssub.s32 %s18, 1
      %s24 = ssub.s32 %s18, 2
      %s25 = sadd.s32 %s18, 1
      %s26 = ssub.s32 %s18, %s25
      %p27 = scmp.eq.s32.totalorder %s26, 0
      %s29 = sadd.s32 %s28, 1
      %s30 = scalar_select %p27, %s28, %s29
      %p33 = pneg %p27
      %p34 = scmp.eq.s32.totalorder %s18, 1
      %p35 = por %p33, %p34
      %p36 = scmp.ne.s32.totalorder %s28, %s31
      %p37 = scmp.eq.s32.totalorder %s18, 0
      %p38 = por %p36, %p37
      %p39 = scmp.ne.s32.totalorder %s28, %s31
      %p40 = scmp.eq.s32.totalorder %s23, 1
      %p41 = por %p39, %p40
      %p42 = scmp.ne.s32.totalorder %s31, %s32
      %p43 = scmp.eq.s32.totalorder %s23, 0
      %p44 = por %p42, %p43
      %p45 = scmp.ne.s32.totalorder %s31, %s32
      %p46 = scmp.eq.s32.totalorder %s24, 1
      %p47 = por %p45, %p46
      %p49 = scmp.ne.s32.totalorder %s32, %s48
      %p50 = scmp.eq.s32.totalorder %s24, 0
      %p51 = por %p49, %p50
      %s52 = ssub.s32 %s18, %s25
      %p53 = scmp.eq.s32.totalorder %s52, 0
      %s55 = sadd.s32 %s54, 1
      %s56 = scalar_select %p53, %s54, %s55
      %p59 = pneg %p53
      %p60 = scmp.eq.s32.totalorder %s18, 1
      %p61 = por %p59, %p60
      %p62 = scmp.ne.s32.totalorder %s54, %s57
      %p63 = scmp.eq.s32.totalorder %s18, 0
      %p64 = por %p62, %p63
      %p65 = scmp.ne.s32.totalorder %s54, %s57
      %p66 = scmp.eq.s32.totalorder %s23, 1
      %p67 = por %p65, %p66
      %p68 = scmp.ne.s32.totalorder %s57, %s58
      %p69 = scmp.eq.s32.totalorder %s23, 0
      %p70 = por %p68, %p69
      %p71 = scmp.ne.s32.totalorder %s57, %s58
      %p72 = scmp.eq.s32.totalorder %s24, 1
      %p73 = por %p71, %p72
      %p75 = scmp.ne.s32.totalorder %s58, %s74
      %p76 = scmp.eq.s32.totalorder %s24, 0
      %p77 = por %p75, %p76
      %s78 = ssub.s32 %s18, %s25
      %p79 = scmp.eq.s32.totalorder %s78, 0
      %s81 = sadd.s32 %s80, 1
      %s82 = scalar_select %p79, %s80, %s81
      %p85 = pneg %p79
      %p86 = scmp.eq.s32.totalorder %s18, 1
      %p87 = por %p85, %p86
      %p88 = scmp.ne.s32.totalorder %s80, %s83
      %p89 = scmp.eq.s32.totalorder %s18, 0
      %p90 = por %p88, %p89
      %p91 = scmp.ne.s32.totalorder %s80, %s83
      %p92 = scmp.eq.s32.totalorder %s23, 1
      %p93 = por %p91, %p92
      %p94 = scmp.ne.s32.totalorder %s83, %s84
      %p95 = scmp.eq.s32.totalorder %s23, 0
      %p96 = por %p94, %p95
      %p97 = scmp.ne.s32.totalorder %s83, %s84
      %p98 = scmp.eq.s32.totalorder %s24, 1
      %p99 = por %p97, %p98
      %p101 = scmp.ne.s32.totalorder %s84, %s100
      %p102 = scmp.eq.s32.totalorder %s24, 0
      %p103 = por %p101, %p102
      %s104 = ssub.s32 %s18, %s25
      %p105 = scmp.eq.s32.totalorder %s104, 0
      %s107 = sadd.s32 %s106, 1
      %s108 = scalar_select %p105, %s106, %s107
      %p111 = pneg %p105
      %p112 = scmp.eq.s32.totalorder %s18, 1
      %p113 = por %p111, %p112
      %p114 = scmp.ne.s32.totalorder %s106, %s109
      %p115 = scmp.eq.s32.totalorder %s18, 0
      %p116 = por %p114, %p115
      %p117 = scmp.ne.s32.totalorder %s106, %s109
      %p118 = scmp.eq.s32.totalorder %s23, 1
      %p119 = por %p117, %p118
      %p120 = scmp.ne.s32.totalorder %s109, %s110
      %p121 = scmp.eq.s32.totalorder %s23, 0
      %p122 = por %p120, %p121
      %p123 = scmp.ne.s32.totalorder %s109, %s110
      %p124 = scmp.eq.s32.totalorder %s24, 1
      %p125 = por %p123, %p124
      %p127 = scmp.ne.s32.totalorder %s110, %s126
      %p128 = scmp.eq.s32.totalorder %s24, 0
      %p129 = por %p127, %p128
      %p130 = scmp.le.s32.totalorder 1, %s18
      %p131 = scmp.lt.s32.totalorder %s18, 3
      %p132 = pnand %p130, %p131
      %p133 = pneg %p132
      // Predicated region
      $region9: #{tpu_custom_call.1} parent=5 // pred_check
        _
      $region10: #{tpu_custom_call.1} parent=5 // pred_check_branch
        %135 = sbr.rel (%p132) target = $region12
      $region11: #{tpu_custom_call.1} parent=5 // pred_region
        %s136 = ssub.s32 %s18, 1
      $region12: #{tpu_custom_call.1} parent=5 // pred_fallthru
        _
      %p137 = scmp.lt.s32.totalorder %s18, 2
      // Predicated region
      $region13: #{tpu_custom_call.1} parent=5 // pred_check
        %p138 = pneg %p137
      $region14: #{tpu_custom_call.1} parent=5 // pred_check_branch
        %140 = sbr.rel (%p138) target = $region16
      $region15: #{tpu_custom_call.1} parent=5 // pred_region
        // Predicated region
        $region17: #{tpu_custom_call.1} parent=15 // pred_check
          %p141 = pneg %p38
        $region18: #{tpu_custom_call.1} parent=15 // pred_check_branch
          %143 = sbr.rel (%p141) target = $region20
        $region19: #{tpu_custom_call.1} parent=15 // pred_region
          %s144 = sand.u32 %s28, 1
          %s145 = scalar_lea.sflag [#allocation3], %s144
          %s146 = sand.u32 %s28, 1
          %s147 = smul.addr %s146, 8
          %s148 = scalar_lea.vmem [#allocation2], %s147
          %s150 = ssub.s32 128, 128
          %151 = vsyncadd %s145, %s150
          %s152 = smul.addr %s18, 2
          %s153 = smul.addr %s152, 64
          %s154 = scalar_lea.hbm %s0, %s153
          %s155 = sshll.u32 %s148, 4
          %s156 = int_to_ptr.vmem [resolvable:$true] %s155
          %161 = dma.hbm_to_vmem [thread:$0]  %s154, 128, %s156, %s145, 64, 64, 4
        $region20: #{tpu_custom_call.1} parent=15 // pred_fallthru
          _
        // Predicated region
        $region21: #{tpu_custom_call.1} parent=15 // pred_check
          %p162 = pneg %p64
        $region22: #{tpu_custom_call.1} parent=15 // pred_check_branch
          %164 = sbr.rel (%p162) target = $region24
        $region23: #{tpu_custom_call.1} parent=15 // pred_region
          %s165 = sand.u32 %s18, 1
          %s166 = scalar_lea.sflag [#allocation6], %s165
          %s167 = sand.u32 %s54, 1
          %s168 = smul.addr %s167, 8
          %s169 = scalar_lea.vmem [#allocation5], %s168
          %s171 = ssub.s32 128, 128
          %172 = vsyncadd %s166, %s171
          %s173 = smul.addr %s18, 2
          %s174 = smul.addr %s173, 64
          %s175 = scalar_lea.hbm %s1, %s174
          %s176 = sshll.u32 %s169, 4
          %s177 = int_to_ptr.vmem [resolvable:$true] %s176
          %182 = dma.hbm_to_vmem [thread:$0]  %s175, 128, %s177, %s166, 64, 64, 4
        $region24: #{tpu_custom_call.1} parent=15 // pred_fallthru
          _
        // Predicated region
        $region25: #{tpu_custom_call.1} parent=15 // pred_check
          %p183 = pneg %p90
        $region26: #{tpu_custom_call.1} parent=15 // pred_check_branch
          %185 = sbr.rel (%p183) target = $region28
        $region27: #{tpu_custom_call.1} parent=15 // pred_region
          %s186 = sand.u32 %s18, 1
          %s187 = scalar_lea.sflag [#allocation6], %s186
          %s188 = sand.u32 %s80, 1
          %s189 = smul.addr %s188, 8
          %s190 = scalar_lea.vmem [#allocation7], %s189
          %s192 = ssub.s32 128, 128
          %193 = vsyncadd %s187, %s192
          %s194 = smul.addr %s18, 2
          %s195 = smul.addr %s194, 64
          %s196 = scalar_lea.hbm %s2, %s195
          %s197 = sshll.u32 %s190, 4
          %s198 = int_to_ptr.vmem [resolvable:$true] %s197
          %203 = dma.hbm_to_vmem [thread:$0]  %s196, 128, %s198, %s187, 64, 64, 4
        $region28: #{tpu_custom_call.1} parent=15 // pred_fallthru
          _
      $region16: #{tpu_custom_call.1} parent=5 // pred_fallthru
        _
      %p204 = scmp.le.s32.totalorder 1, %s18
      %p205 = scmp.lt.s32.totalorder %s18, 3
      %p206 = pnand %p204, %p205
      %p207 = pneg %p206
      // Predicated region
      $region29: #{tpu_custom_call.1} parent=5 // pred_check
        _
      $region30: #{tpu_custom_call.1} parent=5 // pred_check_branch
        %209 = sbr.rel (%p206) target = $region32
      $region31: #{tpu_custom_call.1} parent=5 // pred_region
        %s210 = ssub.s32 %s18, 1
        %s211 = sand.u32 %s31, 1
        %s212 = scalar_lea.sflag [#allocation3], %s211
        %s213 = sand.u32 %s31, 1
        %s214 = smul.addr %s213, 8
        %s215 = scalar_lea.vmem [#allocation2], %s214
        // Predicated region
        $region33: #{tpu_custom_call.1} parent=31 // pred_check
          %p216 = pneg %p44
        $region34: #{tpu_custom_call.1} parent=31 // pred_check_branch
          %218 = sbr.rel (%p216) target = $region36
        $region35: #{tpu_custom_call.1} parent=31 // pred_region
          %219 = dma.done %s212, 128
        $region36: #{tpu_custom_call.1} parent=31 // pred_fallthru
          _
        %s220 = sand.u32 %s23, 1
        %s221 = scalar_lea.sflag [#allocation6], %s220
        %s222 = sand.u32 %s57, 1
        %s223 = smul.addr %s222, 8
        %s224 = scalar_lea.vmem [#allocation5], %s223
        // Predicated region
        $region37: #{tpu_custom_call.1} parent=31 // pred_check
          %p225 = pneg %p70
        $region38: #{tpu_custom_call.1} parent=31 // pred_check_branch
          %227 = sbr.rel (%p225) target = $region40
        $region39: #{tpu_custom_call.1} parent=31 // pred_region
          %228 = dma.done %s221, 128
        $region40: #{tpu_custom_call.1} parent=31 // pred_fallthru
          _
        %s229 = sand.u32 %s23, 1
        %s230 = scalar_lea.sflag [#allocation6], %s229
        %s231 = sand.u32 %s83, 1
        %s232 = smul.addr %s231, 8
        %s233 = scalar_lea.vmem [#allocation7], %s232
        // Predicated region
        $region41: #{tpu_custom_call.1} parent=31 // pred_check
          %p234 = pneg %p96
        $region42: #{tpu_custom_call.1} parent=31 // pred_check_branch
          %236 = sbr.rel (%p234) target = $region44
        $region43: #{tpu_custom_call.1} parent=31 // pred_region
          %237 = dma.done %s230, 128
        $region44: #{tpu_custom_call.1} parent=31 // pred_fallthru
          _
        %s238 = sand.u32 %s31, 1
        %s239 = scalar_lea.sflag [#allocation3], %s238
        %s240 = sand.u32 %s31, 1
        %s241 = smul.addr %s240, 8
        %s242 = scalar_lea.vmem [#allocation2], %s241
        %p243 = pneg %p44
        %p244 = pneg %p41
        %s245 = sand.u32 %s23, 1
        %s246 = scalar_lea.sflag [#allocation6], %s245
        %s247 = sand.u32 %s57, 1
        %s248 = smul.addr %s247, 8
        %s249 = scalar_lea.vmem [#allocation5], %s248
        %p250 = pneg %p70
        %p251 = pneg %p67
        %s252 = sand.u32 %s23, 1
        %s253 = scalar_lea.sflag [#allocation6], %s252
        %s254 = sand.u32 %s83, 1
        %s255 = smul.addr %s254, 8
        %s256 = scalar_lea.vmem [#allocation7], %s255
        %p257 = pneg %p96
        %p258 = pneg %p93
        %p259 = pneg %p122
        %p260 = pneg %p119
        %s261 = sand.u32 %s109, 1
        %s262 = scalar_lea.sflag [#allocation4], %s261
        %s263 = sand.u32 %s109, 1
        %s264 = smul.addr %s263, 16
        %s265 = scalar_lea.vmem [#allocation8], %s264
        %v268 = vld [vmem:[%s215] sm:$0xf]
        %v269 = vld [vmem:[%s215 + $0x4] sm:$0xf]
        %v270 = vmul.bf16 %v268, 1052065461
        %v271 = vmul.bf16 %v269, 1052065461
        %v272 = vld [vmem:[%s224] sm:$0xf]
        %v273 = vld [vmem:[%s224 + $0x4] sm:$0xf]
        %v274 = vld [vmem:[%s233] sm:$0xf]
        %v275 = vld [vmem:[%s233 + $0x4] sm:$0xf]
        %v276 = vlaneseq
        %v277 = vshrl.u32 %v276, 7
        %v278 = vadd.s32 %v277, 8
        %v279 = vlaneseq
        %v280 = vand.u32 %v279, 127
        %vm281 = vcmp.gt.s32.totalorder %v280, %v277
        %vm282 = vcmp.gt.s32.totalorder %v280, %v278
        %v285 = vunpack.c.l.b16 %v270
        %v286 = vunpack.c.l.b16 %v271
        %v287 = vpack.c.b16 %v286, %v285
        %v290 = vunpack.c.l.b16 %v272
        %v291 = vunpack.c.l.b16 %v273
        %v292 = vpack.c.b16 %v291, %v290
        %vm293 = vcmask 64512
        %v295 = vsel %vm293, %v287, 0
        %v298 = vsel %vm293, %v292, 0
        %300 = vmatprep.subr.bf16.mxu0 0
        %301 = vmatpush1.bf16.xpose.msra.mxu0 %v298
        %302 = vmatprep.subr.bf16.mxu0 0
        %303 = vmatpush1.bf16.xpose.msra.mxu0 0
        %304 = vmatprep.subr.bf16.mxu0 0
        %305 = vmatpush1.bf16.xpose.msra.mxu0 0
        %306 = vmatprep.subr.bf16.mxu0 0
        %307 = vmatpush1.bf16.xpose.msra.mxu0 0
        %308 = vmatprep.subr.bf16.mxu0 0
        %309 = vmatpush1.bf16.xpose.msra.mxu0 0
        %310 = vmatprep.subr.bf16.mxu0 0
        %311 = vmatpush1.bf16.xpose.msra.mxu0 0
        %312 = vmatprep.subr.bf16.mxu0 0
        %313 = vmatpush1.bf16.xpose.msra.mxu0 0
        %314 = vmatprep.subr.bf16.mxu0 0
        %315 = vmatpush1.bf16.xpose.msra.mxu0 0
        %316 = vmatprep.subr.bf16.mxu0 0
        %317 = vmatpush1.bf16.xpose.msra.mxu0 0
        %318 = vmatprep.subr.bf16.mxu0 0
        %319 = vmatpush1.bf16.xpose.msra.mxu0 0
        %320 = vmatprep.subr.bf16.mxu0 0
        %321 = vmatpush1.bf16.xpose.msra.mxu0 0
        %322 = vmatprep.subr.bf16.mxu0 0
        %323 = vmatpush1.bf16.xpose.msra.mxu0 0
        %324 = vmatprep.subr.bf16.mxu0 0
        %325 = vmatpush1.bf16.xpose.msra.mxu0 0
        %326 = vmatprep.subr.bf16.mxu0 0
        %327 = vmatpush1.bf16.xpose.msra.mxu0 0
        %328 = vmatprep.subr.bf16.mxu0 0
        %329 = vmatpush1.bf16.xpose.msra.mxu0 0
        %330 = vmatprep.subr.bf16.mxu0 0
        %331 = vmatpush1.bf16.xpose.msra.mxu0 0
        %332 = vmatprep.mubr.bf16.mxu0 0
        %333 = vmatmul.mubr.bf16.gmra.mrb[0].mxu0 %v295
        %v334 = vpop.f32.mrb[0].mxu0
        %v335 = vadd.f32 0.0, %v334
        %v336 = vpop.f32.mrb[0].mxu0
        %v337 = vpop.f32.mrb[0].mxu0
        %v338 = vadd.f32 0.0, %v337
        %v339 = vpop.f32.mrb[0].mxu0
        %340 = vdwg.mxu0
        %v341 = vsel %vm281, -1e+30, %v335
        %v342 = vsel %vm282, -1e+30, %v338
        %vm343 = vcmask 130048
        %v344 = vsel %vm343, %v341, -inf
        %345 = vmax.xlane.f32.xlu0 %v344
        %v346 = vpop.xlane.xlu0 %345
        %v347 = vsel %vm343, %v342, -inf
        %348 = vmax.xlane.f32.xlu0 %v347
        %v349 = vpop.xlane.xlu0 %348
        %v350 = vsub.f32 %v341, %v346
        %v351 = vsub.f32 %v342, %v349
        %v352 = vmul.f32 %v350, 1.442695
        %v353 = vpow.pop %v352
        %v354 = vmul.f32 %v351, 1.442695
        %v355 = vpow.pop %v354
        %v356 = vsel %vm343, %v353, 0.0
        %357 = vadd.xlane.f32.xlu0 %v356
        %v358 = vpop.xlane.xlu0 %357
        %v359 = vsel %vm343, %v355, 0.0
        %360 = vadd.xlane.f32.xlu0 %v359
        %v361 = vpop.xlane.xlu0 %360
        %v362 = vrcp.pop %v358
        %v363 = vrcp.pop %v361
        %v364 = vmul.f32 %v353, %v362
        %v365 = vmul.f32 %v355, %v363
        %v366 = vpack.c.bf16 %v365, %v364
        %v369 = vunpack.c.l.b16 %v274
        %v370 = vunpack.c.l.b16 %v275
        %v371 = vpack.c.b16 %v370, %v369
        %v374 = vsel %vm343, %v366, 0
        %376 = vmatprep.subr.bf16.mxu0 0
        %377 = vmatpush1.bf16.msra.mxu0 %v371
        %378 = vmatprep.subr.bf16.mxu0 0
        %379 = vmatpush1.bf16.msra.mxu0 0
        %380 = vmatprep.subr.bf16.mxu0 0
        %381 = vmatpush1.bf16.msra.mxu0 0
        %382 = vmatprep.subr.bf16.mxu0 0
        %383 = vmatpush1.bf16.msra.mxu0 0
        %384 = vmatprep.subr.bf16.mxu0 0
        %385 = vmatpush1.bf16.msra.mxu0 0
        %386 = vmatprep.subr.bf16.mxu0 0
        %387 = vmatpush1.bf16.msra.mxu0 0
        %388 = vmatprep.subr.bf16.mxu0 0
        %389 = vmatpush1.bf16.msra.mxu0 0
        %390 = vmatprep.subr.bf16.mxu0 0
        %391 = vmatpush1.bf16.msra.mxu0 0
        %392 = vmatprep.subr.bf16.mxu0 0
        %393 = vmatpush1.bf16.msra.mxu0 0
        %394 = vmatprep.subr.bf16.mxu0 0
        %395 = vmatpush1.bf16.msra.mxu0 0
        %396 = vmatprep.subr.bf16.mxu0 0
        %397 = vmatpush1.bf16.msra.mxu0 0
        %398 = vmatprep.subr.bf16.mxu0 0
        %399 = vmatpush1.bf16.msra.mxu0 0
        %400 = vmatprep.subr.bf16.mxu0 0
        %401 = vmatpush1.bf16.msra.mxu0 0
        %402 = vmatprep.subr.bf16.mxu0 0
        %403 = vmatpush1.bf16.msra.mxu0 0
        %404 = vmatprep.subr.bf16.mxu0 0
        %405 = vmatpush1.bf16.msra.mxu0 0
        %406 = vmatprep.subr.bf16.mxu0 0
        %407 = vmatpush1.bf16.msra.mxu0 0
        %408 = vmatprep.mubr.bf16.mxu0 0
        %409 = vmatmul.mubr.bf16.gmra.mrb[0].mxu0 %v374
        %v410 = vpop.f32.mrb[0].mxu0
        %v411 = vadd.f32 0.0, %v410
        %v412 = vpop.f32.mrb[0].mxu0
        %v413 = vpop.f32.mrb[0].mxu0
        %v414 = vadd.f32 0.0, %v413
        %v415 = vpop.f32.mrb[0].mxu0
        %416 = vdwg.mxu0
        %417 = vrot.lane.b32.xlu0 %v287, 120
        %v418 = vpop.permute.xlu0 %417
        %419 = vrot.lane.b32.xlu0 %v292, 120
        %v420 = vpop.permute.xlu0 %419
        %v422 = vsel %vm293, %v418, 0
        %v425 = vsel %vm293, %v420, 0
        %427 = vmatprep.subr.bf16.mxu0 0
        %428 = vmatpush1.bf16.xpose.msra.mxu0 %v425
        %429 = vmatprep.subr.bf16.mxu0 0
        %430 = vmatpush1.bf16.xpose.msra.mxu0 0
        %431 = vmatprep.subr.bf16.mxu0 0
        %432 = vmatpush1.bf16.xpose.msra.mxu0 0
        %433 = vmatprep.subr.bf16.mxu0 0
        %434 = vmatpush1.bf16.xpose.msra.mxu0 0
        %435 = vmatprep.subr.bf16.mxu0 0
        %436 = vmatpush1.bf16.xpose.msra.mxu0 0
        %437 = vmatprep.subr.bf16.mxu0 0
        %438 = vmatpush1.bf16.xpose.msra.mxu0 0
        %439 = vmatprep.subr.bf16.mxu0 0
        %440 = vmatpush1.bf16.xpose.msra.mxu0 0
        %441 = vmatprep.subr.bf16.mxu0 0
        %442 = vmatpush1.bf16.xpose.msra.mxu0 0
        %443 = vmatprep.subr.bf16.mxu0 0
        %444 = vmatpush1.bf16.xpose.msra.mxu0 0
        %445 = vmatprep.subr.bf16.mxu0 0
        %446 = vmatpush1.bf16.xpose.msra.mxu0 0
        %447 = vmatprep.subr.bf16.mxu0 0
        %448 = vmatpush1.bf16.xpose.msra.mxu0 0
        %449 = vmatprep.subr.bf16.mxu0 0
        %450 = vmatpush1.bf16.xpose.msra.mxu0 0
        %451 = vmatprep.subr.bf16.mxu0 0
        %452 = vmatpush1.bf16.xpose.msra.mxu0 0
        %453 = vmatprep.subr.bf16.mxu0 0
        %454 = vmatpush1.bf16.xpose.msra.mxu0 0
        %455 = vmatprep.subr.bf16.mxu0 0
        %456 = vmatpush1.bf16.xpose.msra.mxu0 0
        %457 = vmatprep.subr.bf16.mxu0 0
        %458 = vmatpush1.bf16.xpose.msra.mxu0 0
        %459 = vmatprep.mubr.bf16.mxu0 0
        %460 = vmatmul.mubr.bf16.gmra.mrb[0].mxu0 %v422
        %v461 = vpop.f32.mrb[0].mxu0
        %v462 = vadd.f32 0.0, %v461
        %v463 = vpop.f32.mrb[0].mxu0
        %v464 = vpop.f32.mrb[0].mxu0
        %v465 = vadd.f32 0.0, %v464
        %v466 = vpop.f32.mrb[0].mxu0
        %467 = vdwg.mxu0
        %v468 = vsel %vm281, -1e+30, %v462
        %v469 = vsel %vm282, -1e+30, %v465
        %v470 = vsel %vm343, %v468, -inf
        %471 = vmax.xlane.f32.xlu0 %v470
        %v472 = vpop.xlane.xlu0 %471
        %v473 = vsel %vm343, %v469, -inf
        %474 = vmax.xlane.f32.xlu0 %v473
        %v475 = vpop.xlane.xlu0 %474
        %v476 = vsub.f32 %v468, %v472
        %v477 = vsub.f32 %v469, %v475
        %v478 = vmul.f32 %v476, 1.442695
        %v479 = vpow.pop %v478
        %v480 = vmul.f32 %v477, 1.442695
        %v481 = vpow.pop %v480
        %v482 = vsel %vm343, %v479, 0.0
        %483 = vadd.xlane.f32.xlu0 %v482
        %v484 = vpop.xlane.xlu0 %483
        %v485 = vsel %vm343, %v481, 0.0
        %486 = vadd.xlane.f32.xlu0 %v485
        %v487 = vpop.xlane.xlu0 %486
        %v488 = vrcp.pop %v484
        %v489 = vrcp.pop %v487
        %v490 = vmul.f32 %v479, %v488
        %v491 = vmul.f32 %v481, %v489
        %v492 = vpack.c.bf16 %v491, %v490
        %493 = vrot.lane.b32.xlu0 %v371, 120
        %v494 = vpop.permute.xlu0 %493
        %v497 = vsel %vm343, %v492, 0
        %499 = vmatprep.subr.bf16.mxu0 0
        %500 = vmatpush1.bf16.msra.mxu0 %v494
        %501 = vmatprep.subr.bf16.mxu0 0
        %502 = vmatpush1.bf16.msra.mxu0 0
        %503 = vmatprep.subr.bf16.mxu0 0
        %504 = vmatpush1.bf16.msra.mxu0 0
        %505 = vmatprep.subr.bf16.mxu0 0
        %506 = vmatpush1.bf16.msra.mxu0 0
        %507 = vmatprep.subr.bf16.mxu0 0
        %508 = vmatpush1.bf16.msra.mxu0 0
        %509 = vmatprep.subr.bf16.mxu0 0
        %510 = vmatpush1.bf16.msra.mxu0 0
        %511 = vmatprep.subr.bf16.mxu0 0
        %512 = vmatpush1.bf16.msra.mxu0 0
        %513 = vmatprep.subr.bf16.mxu0 0
        %514 = vmatpush1.bf16.msra.mxu0 0
        %515 = vmatprep.subr.bf16.mxu0 0
        %516 = vmatpush1.bf16.msra.mxu0 0
        %517 = vmatprep.subr.bf16.mxu0 0
        %518 = vmatpush1.bf16.msra.mxu0 0
        %519 = vmatprep.subr.bf16.mxu0 0
        %520 = vmatpush1.bf16.msra.mxu0 0
        %521 = vmatprep.subr.bf16.mxu0 0
        %522 = vmatpush1.bf16.msra.mxu0 0
        %523 = vmatprep.subr.bf16.mxu0 0
        %524 = vmatpush1.bf16.msra.mxu0 0
        %525 = vmatprep.subr.bf16.mxu0 0
        %526 = vmatpush1.bf16.msra.mxu0 0
        %527 = vmatprep.subr.bf16.mxu0 0
        %528 = vmatpush1.bf16.msra.mxu0 0
        %529 = vmatprep.subr.bf16.mxu0 0
        %530 = vmatpush1.bf16.msra.mxu0 0
        %531 = vmatprep.mubr.bf16.mxu0 0
        %532 = vmatmul.mubr.bf16.gmra.mrb[0].mxu0 %v497
        %v533 = vpop.f32.mrb[0].mxu0
        %v534 = vadd.f32 0.0, %v533
        %v535 = vpop.f32.mrb[0].mxu0
        %v536 = vpop.f32.mrb[0].mxu0
        %v537 = vadd.f32 0.0, %v536
        %v538 = vpop.f32.mrb[0].mxu0
        %539 = vdwg.mxu0
        %540 = vrot.lane.b32.xlu0 %v287, 112
        %v541 = vpop.permute.xlu0 %540
        %542 = vrot.lane.b32.xlu0 %v292, 112
        %v543 = vpop.permute.xlu0 %542
        %v545 = vsel %vm293, %v541, 0
        %v548 = vsel %vm293, %v543, 0
        %550 = vmatprep.subr.bf16.mxu0 0
        %551 = vmatpush1.bf16.xpose.msra.mxu0 %v548
        %552 = vmatprep.subr.bf16.mxu0 0
        %553 = vmatpush1.bf16.xpose.msra.mxu0 0
        %554 = vmatprep.subr.bf16.mxu0 0
        %555 = vmatpush1.bf16.xpose.msra.mxu0 0
        %556 = vmatprep.subr.bf16.mxu0 0
        %557 = vmatpush1.bf16.xpose.msra.mxu0 0
        %558 = vmatprep.subr.bf16.mxu0 0
        %559 = vmatpush1.bf16.xpose.msra.mxu0 0
        %560 = vmatprep.subr.bf16.mxu0 0
        %561 = vmatpush1.bf16.xpose.msra.mxu0 0
        %562 = vmatprep.subr.bf16.mxu0 0
        %563 = vmatpush1.bf16.xpose.msra.mxu0 0
        %564 = vmatprep.subr.bf16.mxu0 0
        %565 = vmatpush1.bf16.xpose.msra.mxu0 0
        %566 = vmatprep.subr.bf16.mxu0 0
        %567 = vmatpush1.bf16.xpose.msra.mxu0 0
        %568 = vmatprep.subr.bf16.mxu0 0
        %569 = vmatpush1.bf16.xpose.msra.mxu0 0
        %570 = vmatprep.subr.bf16.mxu0 0
        %571 = vmatpush1.bf16.xpose.msra.mxu0 0
        %572 = vmatprep.subr.bf16.mxu0 0
        %573 = vmatpush1.bf16.xpose.msra.mxu0 0
        %574 = vmatprep.subr.bf16.mxu0 0
        %575 = vmatpush1.bf16.xpose.msra.mxu0 0
        %576 = vmatprep.subr.bf16.mxu0 0
        %577 = vmatpush1.bf16.xpose.msra.mxu0 0
        %578 = vmatprep.subr.bf16.mxu0 0
        %579 = vmatpush1.bf16.xpose.msra.mxu0 0
        %580 = vmatprep.subr.bf16.mxu0 0
        %581 = vmatpush1.bf16.xpose.msra.mxu0 0
        %582 = vmatprep.mubr.bf16.mxu0 0
        %583 = vmatmul.mubr.bf16.gmra.mrb[0].mxu0 %v545
        %v584 = vpop.f32.mrb[0].mxu0
        %v585 = vadd.f32 0.0, %v584
        %v586 = vpop.f32.mrb[0].mxu0
        %v587 = vpop.f32.mrb[0].mxu0
        %v588 = vadd.f32 0.0, %v587
        %v589 = vpop.f32.mrb[0].mxu0
        %590 = vdwg.mxu0
        %v591 = vsel %vm281, -1e+30, %v585
        %v592 = vsel %vm282, -1e+30, %v588
        %v593 = vsel %vm343, %v591, -inf
        %594 = vmax.xlane.f32.xlu0 %v593
        %v595 = vpop.xlane.xlu0 %594
        %v596 = vsel %vm343, %v592, -inf
        %597 = vmax.xlane.f32.xlu0 %v596
        %v598 = vpop.xlane.xlu0 %597
        %v599 = vsub.f32 %v591, %v595
        %v600 = vsub.f32 %v592, %v598
        %v601 = vmul.f32 %v599, 1.442695
        %v602 = vpow.pop %v601
        %v603 = vmul.f32 %v600, 1.442695
        %v604 = vpow.pop %v603
        %v605 = vsel %vm343, %v602, 0.0
        %606 = vadd.xlane.f32.xlu0 %v605
        %v607 = vpop.xlane.xlu0 %606
        %v608 = vsel %vm343, %v604, 0.0
        %609 = vadd.xlane.f32.xlu0 %v608
        %v610 = vpop.xlane.xlu0 %609
        %v611 = vrcp.pop %v607
        %v612 = vrcp.pop %v610
        %v613 = vmul.f32 %v602, %v611
        %v614 = vmul.f32 %v604, %v612
        %v615 = vpack.c.bf16 %v614, %v613
        %616 = vrot.lane.b32.xlu0 %v371, 112
        %v617 = vpop.permute.xlu0 %616
        %v620 = vsel %vm343, %v615, 0
        %622 = vmatprep.subr.bf16.mxu0 0
        %623 = vmatpush1.bf16.msra.mxu0 %v617
        %624 = vmatprep.subr.bf16.mxu0 0
        %625 = vmatpush1.bf16.msra.mxu0 0
        %626 = vmatprep.subr.bf16.mxu0 0
        %627 = vmatpush1.bf16.msra.mxu0 0
        %628 = vmatprep.subr.bf16.mxu0 0
        %629 = vmatpush1.bf16.msra.mxu0 0
        %630 = vmatprep.subr.bf16.mxu0 0
        %631 = vmatpush1.bf16.msra.mxu0 0
        %632 = vmatprep.subr.bf16.mxu0 0
        %633 = vmatpush1.bf16.msra.mxu0 0
        %634 = vmatprep.subr.bf16.mxu0 0
        %635 = vmatpush1.bf16.msra.mxu0 0
        %636 = vmatprep.subr.bf16.mxu0 0
        %637 = vmatpush1.bf16.msra.mxu0 0
        %638 = vmatprep.subr.bf16.mxu0 0
        %639 = vmatpush1.bf16.msra.mxu0 0
        %640 = vmatprep.subr.bf16.mxu0 0
        %641 = vmatpush1.bf16.msra.mxu0 0
        %642 = vmatprep.subr.bf16.mxu0 0
        %643 = vmatpush1.bf16.msra.mxu0 0
        %644 = vmatprep.subr.bf16.mxu0 0
        %645 = vmatpush1.bf16.msra.mxu0 0
        %646 = vmatprep.subr.bf16.mxu0 0
        %647 = vmatpush1.bf16.msra.mxu0 0
        %648 = vmatprep.subr.bf16.mxu0 0
        %649 = vmatpush1.bf16.msra.mxu0 0
        %650 = vmatprep.subr.bf16.mxu0 0
        %651 = vmatpush1.bf16.msra.mxu0 0
        %652 = vmatprep.subr.bf16.mxu0 0
        %653 = vmatpush1.bf16.msra.mxu0 0
        %654 = vmatprep.mubr.bf16.mxu0 0
        %655 = vmatmul.mubr.bf16.gmra.mrb[0].mxu0 %v620
        %v656 = vpop.f32.mrb[0].mxu0
        %v657 = vadd.f32 0.0, %v656
        %v658 = vpop.f32.mrb[0].mxu0
        %v659 = vpop.f32.mrb[0].mxu0
        %v660 = vadd.f32 0.0, %v659
        %v661 = vpop.f32.mrb[0].mxu0
        %662 = vdwg.mxu0
        %663 = vrot.lane.b32.xlu0 %v287, 104
        %v664 = vpop.permute.xlu0 %663
        %665 = vrot.lane.b32.xlu0 %v292, 104
        %v666 = vpop.permute.xlu0 %665
        %v668 = vsel %vm293, %v664, 0
        %v671 = vsel %vm293, %v666, 0
        %673 = vmatprep.subr.bf16.mxu0 0
        %674 = vmatpush1.bf16.xpose.msra.mxu0 %v671
        %675 = vmatprep.subr.bf16.mxu0 0
        %676 = vmatpush1.bf16.xpose.msra.mxu0 0
        %677 = vmatprep.subr.bf16.mxu0 0
        %678 = vmatpush1.bf16.xpose.msra.mxu0 0
        %679 = vmatprep.subr.bf16.mxu0 0
        %680 = vmatpush1.bf16.xpose.msra.mxu0 0
        %681 = vmatprep.subr.bf16.mxu0 0
        %682 = vmatpush1.bf16.xpose.msra.mxu0 0
        %683 = vmatprep.subr.bf16.mxu0 0
        %684 = vmatpush1.bf16.xpose.msra.mxu0 0
        %685 = vmatprep.subr.bf16.mxu0 0
        %686 = vmatpush1.bf16.xpose.msra.mxu0 0
        %687 = vmatprep.subr.bf16.mxu0 0
        %688 = vmatpush1.bf16.xpose.msra.mxu0 0
        %689 = vmatprep.subr.bf16.mxu0 0
        %690 = vmatpush1.bf16.xpose.msra.mxu0 0
        %691 = vmatprep.subr.bf16.mxu0 0
        %692 = vmatpush1.bf16.xpose.msra.mxu0 0
        %693 = vmatprep.subr.bf16.mxu0 0
        %694 = vmatpush1.bf16.xpose.msra.mxu0 0
        %695 = vmatprep.subr.bf16.mxu0 0
        %696 = vmatpush1.bf16.xpose.msra.mxu0 0
        %697 = vmatprep.subr.bf16.mxu0 0
        %698 = vmatpush1.bf16.xpose.msra.mxu0 0
        %699 = vmatprep.subr.bf16.mxu0 0
        %700 = vmatpush1.bf16.xpose.msra.mxu0 0
        %701 = vmatprep.subr.bf16.mxu0 0
        %702 = vmatpush1.bf16.xpose.msra.mxu0 0
        %703 = vmatprep.subr.bf16.mxu0 0
        %704 = vmatpush1.bf16.xpose.msra.mxu0 0
        %705 = vmatprep.mubr.bf16.mxu0 0
        %706 = vmatmul.mubr.bf16.gmra.mrb[0].mxu0 %v668
        %v707 = vpop.f32.mrb[0].mxu0
        %v708 = vadd.f32 0.0, %v707
        %v709 = vpop.f32.mrb[0].mxu0
        %v710 = vpop.f32.mrb[0].mxu0
        %v711 = vadd.f32 0.0, %v710
        %v712 = vpop.f32.mrb[0].mxu0
        %713 = vdwg.mxu0
        %v714 = vsel %vm281, -1e+30, %v708
        %v715 = vsel %vm282, -1e+30, %v711
        %v716 = vsel %vm343, %v714, -inf
        %717 = vmax.xlane.f32.xlu0 %v716
        %v718 = vpop.xlane.xlu0 %717
        %v719 = vsel %vm343, %v715, -inf
        %720 = vmax.xlane.f32.xlu0 %v719
        %v721 = vpop.xlane.xlu0 %720
        %v722 = vsub.f32 %v714, %v718
        %v723 = vsub.f32 %v715, %v721
        %v724 = vmul.f32 %v722, 1.442695
        %v725 = vpow.pop %v724
        %v726 = vmul.f32 %v723, 1.442695
        %v727 = vpow.pop %v726
        %v728 = vsel %vm343, %v725, 0.0
        %729 = vadd.xlane.f32.xlu0 %v728
        %v730 = vpop.xlane.xlu0 %729
        %v731 = vsel %vm343, %v727, 0.0
        %732 = vadd.xlane.f32.xlu0 %v731
        %v733 = vpop.xlane.xlu0 %732
        %v734 = vrcp.pop %v730
        %v735 = vrcp.pop %v733
        %v736 = vmul.f32 %v725, %v734
        %v737 = vmul.f32 %v727, %v735
        %v738 = vpack.c.bf16 %v737, %v736
        %739 = vrot.lane.b32.xlu0 %v371, 104
        %v740 = vpop.permute.xlu0 %739
        %v743 = vsel %vm343, %v738, 0
        %745 = vmatprep.subr.bf16.mxu0 0
        %746 = vmatpush1.bf16.msra.mxu0 %v740
        %747 = vmatprep.subr.bf16.mxu0 0
        %748 = vmatpush1.bf16.msra.mxu0 0
        %749 = vmatprep.subr.bf16.mxu0 0
        %750 = vmatpush1.bf16.msra.mxu0 0
        %751 = vmatprep.subr.bf16.mxu0 0
        %752 = vmatpush1.bf16.msra.mxu0 0
        %753 = vmatprep.subr.bf16.mxu0 0
        %754 = vmatpush1.bf16.msra.mxu0 0
        %755 = vmatprep.subr.bf16.mxu0 0
        %756 = vmatpush1.bf16.msra.mxu0 0
        %757 = vmatprep.subr.bf16.mxu0 0
        %758 = vmatpush1.bf16.msra.mxu0 0
        %759 = vmatprep.subr.bf16.mxu0 0
        %760 = vmatpush1.bf16.msra.mxu0 0
        %761 = vmatprep.subr.bf16.mxu0 0
        %762 = vmatpush1.bf16.msra.mxu0 0
        %763 = vmatprep.subr.bf16.mxu0 0
        %764 = vmatpush1.bf16.msra.mxu0 0
        %765 = vmatprep.subr.bf16.mxu0 0
        %766 = vmatpush1.bf16.msra.mxu0 0
        %767 = vmatprep.subr.bf16.mxu0 0
        %768 = vmatpush1.bf16.msra.mxu0 0
        %769 = vmatprep.subr.bf16.mxu0 0
        %770 = vmatpush1.bf16.msra.mxu0 0
        %771 = vmatprep.subr.bf16.mxu0 0
        %772 = vmatpush1.bf16.msra.mxu0 0
        %773 = vmatprep.subr.bf16.mxu0 0
        %774 = vmatpush1.bf16.msra.mxu0 0
        %775 = vmatprep.subr.bf16.mxu0 0
        %776 = vmatpush1.bf16.msra.mxu0 0
        %777 = vmatprep.mubr.bf16.mxu0 0
        %778 = vmatmul.mubr.bf16.gmra.mrb[0].mxu0 %v743
        %v779 = vpop.f32.mrb[0].mxu0
        %v780 = vadd.f32 0.0, %v779
        %v781 = vpop.f32.mrb[0].mxu0
        %v782 = vpop.f32.mrb[0].mxu0
        %v783 = vadd.f32 0.0, %v782
        %v784 = vpop.f32.mrb[0].mxu0
        %785 = vdwg.mxu0
        %788 = vrot.lane.b32.xlu0 %v534, 8
        %v789 = vpop.permute.xlu0 %788
        %790 = vrot.lane.b32.xlu0 %v537, 8
        %v791 = vpop.permute.xlu0 %790
        %796 = vrot.lane.b32.xlu0 %v657, 16
        %v797 = vpop.permute.xlu0 %796
        %798 = vrot.lane.b32.xlu0 %v660, 16
        %v799 = vpop.permute.xlu0 %798
        %804 = vrot.lane.b32.xlu0 %v780, 24
        %v805 = vpop.permute.xlu0 %804
        %806 = vrot.lane.b32.xlu0 %v783, 24
        %v807 = vpop.permute.xlu0 %806
        %v810 = vsel %vm293, %v411, %v789
        %v811 = vsel %vm293, %v414, %v791
        %v812 = vsel %vm343, %v810, %v797
        %v813 = vsel %vm343, %v811, %v799
        %vm814 = vcmask 195584
        %v815 = vsel %vm814, %v812, %v805
        %v816 = vsel %vm814, %v813, %v807
        %vm817 = vcmask 261120
        %818 = vst.msk [vmem:[%s265] sm:$0xff] %vm817, %v815
        %819 = vst.msk [vmem:[%s265 + $0x8] sm:$0xff] %vm817, %v816
        %s820 = sand.u32 %s109, 1
        %s821 = scalar_lea.sflag [#allocation4], %s820
        %s822 = sand.u32 %s109, 1
        %s823 = smul.addr %s822, 16
        %s824 = scalar_lea.vmem [#allocation8], %s823
        // Predicated region
        $region45: #{tpu_custom_call.1} parent=31 // pred_check
          %p825 = pneg %p119
        $region46: #{tpu_custom_call.1} parent=31 // pred_check_branch
          %827 = sbr.rel (%p825) target = $region48
        $region47: #{tpu_custom_call.1} parent=31 // pred_region
          %s829 = ssub.s32 256, 256
          %830 = vsyncadd %s821, %s829
          %s831 = smul.addr %s23, 2
          %s832 = smul.addr %s831, 128
          %s833 = scalar_lea.hbm %s3, %s832
          %s834 = sshll.u32 %s824, 4
          %s835 = int_to_ptr.vmem [resolvable:$true] %s834
          %840 = dma.vmem_to_hbm [thread:$0]  %s835, 256, %s833, %s821, 128, 128, 8
        $region48: #{tpu_custom_call.1} parent=31 // pred_fallthru
          _
      $region32: #{tpu_custom_call.1} parent=5 // pred_fallthru
        _
      %p841 = scmp.le.s32.totalorder 2, %s18
      // Predicated region
      $region49: #{tpu_custom_call.1} parent=5 // pred_check
        %p842 = pneg %p841
      $region50: #{tpu_custom_call.1} parent=5 // pred_check_branch
        %844 = sbr.rel (%p842) target = $region52
      $region51: #{tpu_custom_call.1} parent=5 // pred_region
        %s845 = ssub.s32 %s18, 2
        // Predicated region
        $region53: #{tpu_custom_call.1} parent=51 // pred_check
          %p846 = pneg %p125
        $region54: #{tpu_custom_call.1} parent=51 // pred_check_branch
          %848 = sbr.rel (%p846) target = $region56
        $region55: #{tpu_custom_call.1} parent=51 // pred_region
          %s849 = sand.u32 %s110, 1
          %s850 = scalar_lea.sflag [#allocation4], %s849
          %s851 = sand.u32 %s110, 1
          %s852 = smul.addr %s851, 16
          %s853 = scalar_lea.vmem [#allocation8], %s852
          %854 = dma.done %s850, 256
        $region56: #{tpu_custom_call.1} parent=51 // pred_fallthru
          _
      $region52: #{tpu_custom_call.1} parent=5 // pred_fallthru
        _
    $region6: #{tpu_custom_call.1} parent=1 // loop_footer
      %s22 = sadd.s32 1, %s18
    $region7: #{tpu_custom_call.1} parent=1 // loop_footer_branch
      %17 = sbr.rel target = $region3
    $region8: #{tpu_custom_call.1} parent=1 // loop_exit
      _
    %855 = vsyncpa [#allocation3], 1
    %s856 = scalar_lea.sflag [#allocation3], 1
    %857 = vsyncpa %s856, 1
    %858 = vsyncpa [#allocation6], 1
    %s859 = scalar_lea.sflag [#allocation6], 1
    %860 = vsyncpa %s859, 1
    %861 = vsyncpa [#allocation4], 1
    %s862 = scalar_lea.sflag [#allocation4], 1
    %863 = vsyncpa %s862, 1

</llo_original>
